<compile_context>
chip_gen: v6e
topology: v6e:2x2x1
jax: 0.10.0
libtpu: 0.0.40
codegen_flags: <defaults>
</compile_context>

<pallas_src>
import jax
import jax.numpy as jnp
from jax.experimental import pallas as pl
from jax.experimental.pallas import tpu as pltpu

LANES = 128
MIN_TILE_ROWS = 2048            # 1 MiB f32 per input block: amortizes ~0.35 us/step
SMALL_FALLBACK_BYTES = 512 * 1024  # below this total input size, use plain XLA
VMEM_LIMIT_BYTES = 32 * 1024 * 1024


def _max_tile_rows():
    """Per-generation main-block row count (multiple of 32)."""
    try:
        kind = jax.devices()[0].device_kind.lower()
    except Exception:
        kind = ""
    if "v5" in kind:
        # v5e: ~0.8 TB/s HBM; 2 MiB f32 per input block already hides per-step
        # overhead and stays well inside the 16 MiB default scoped VMEM.
        return 4096
    # v6e / v7x (and unknown): 4 MiB f32 per input block; with 2 inputs x
    # double-buffering that is 16 MiB, inside v7x's 64 MiB physical VMEM.
    return 8192


def _row_granule(dtype):
    """Sublane granularity so blocks respect native tiling for any dtype."""
    itemsize = jnp.dtype(dtype).itemsize
    return max(8, 32 // itemsize)     # f32 -> 8, bf16 -> 16, 8-bit -> 32


def _choose_tile_rows(rows, granule, max_tile_rows):
    rows_g = (rows // granule) * granule
    if rows_g == 0:
        return 0
    tile = min(max_tile_rows, rows_g)
    # Prefer >=4 grid steps (v7x has 2 TensorCores; a 1-step grid idles one)
    # as long as each block stays >= MIN_TILE_ROWS.
    if rows_g // tile < 4 and tile > MIN_TILE_ROWS:
        want = -(-rows_g // 4)                              # ceil(rows_g / 4)
        want = ((want + granule - 1) // granule) * granule  # round up to granule
        tile = max(MIN_TILE_ROWS, min(tile, want))
    return tile


def _make_kernel(tile_rows):
    groups = tile_rows // 8

    def kernel(x_ref, t_ref, out_ref):
        d = x_ref[...].astype(jnp.float32) - t_ref[...].astype(jnp.float32)
        sq = d * d
        # Reduce only over the leading row-group axis: per-vreg VPU adds,
        # no cross-lane/sublane XLU work inside the kernel.
        out_ref[...] = jnp.sum(sq.reshape(groups, 8, LANES), axis=0)

    return kernel


def content_loss_forward(x, target, *, small_fallback_bytes=SMALL_FALLBACK_BYTES):
    """ContentLoss forward: returns (x_passthrough, mse_loss_scalar)."""
    assert x.shape == target.shape, "ContentLoss requires x.shape == target.shape"
    n_valid = int(x.size)
    if n_valid == 0:
        return x, jnp.float32(0.0)

    xf = x.reshape(-1)
    tf = target.reshape(-1)

    rows = n_valid // LANES
    granule = _row_granule(x.dtype)
    tile_rows = _choose_tile_rows(rows, granule, _max_tile_rows())

    in_bytes = n_valid * (jnp.dtype(x.dtype).itemsize + jnp.dtype(target.dtype).itemsize)
    if tile_rows == 0 or in_bytes < small_fallback_bytes:
        # Tiny inputs: a single fused XLA sub/square/reduce pass beats the
        # pallas_call launch + reshape + separate partials reduce.
        loss = jnp.mean(jnp.square(xf.astype(jnp.float32) - tf.astype(jnp.float32)))
        return x, loss

    # Prefix covered by the Pallas grid (exact multiple of tile_rows rows).
    n_main_rows = (rows // tile_rows) * tile_rows
    n_main = n_main_rows * LANES
    grid = n_main_rows // tile_rows

    x2 = xf[:n_main].reshape(n_main_rows, LANES)
    t2 = tf[:n_main].reshape(n_main_rows, LANES)

    partials = pl.pallas_call(
        _make_kernel(tile_rows),
        out_shape=jax.ShapeDtypeStruct((grid * 8, LANES), jnp.float32),
        grid=(grid,),
        in_specs=[
            pl.BlockSpec((tile_rows, LANES), lambda i: (i, 0)),
            pl.BlockSpec((tile_rows, LANES), lambda i: (i, 0)),
        ],
        out_specs=pl.BlockSpec((8, LANES), lambda i: (i, 0)),
        compiler_params=pltpu.CompilerParams(
            # Independent per-block partial sums -> megacore-shardable on v7x.
            dimension_semantics=("parallel",),
            vmem_limit_bytes=VMEM_LIMIT_BYTES,
        ),
    )(x2, t2)

    # Tiny final reduce (grid*8*128 f32 values) in plain JAX.
    total = jnp.sum(partials, dtype=jnp.float32)

    # Remainder (< tile_rows*128 elements): plain JAX, single streaming pass.
    if n_main < n_valid:
        tail_d = xf[n_main:].astype(jnp.float32) - tf[n_main:].astype(jnp.float32)
        total = total + jnp.sum(jnp.square(tail_d))

    loss = total * (1.0 / n_valid)

    # Identity pass-through: the module returns its input unchanged.
    # TODO(synk): the module's stateful self.loss attribute and backward()
    # (autograd) have no Pallas equivalent; the loss is returned alongside x.
    return x, loss


if __name__ == "__main__":
    key = jax.random.PRNGKey(0)
    kx, kt, kx2, kt2 = jax.random.split(key, 4)

    # Test 1: small NCHW feature map, forced through the Pallas kernel path.
    shape = (2, 4, 16, 16)
    x = jax.random.normal(kx, shape, dtype=jnp.float32)
    target = jax.random.normal(kt, shape, dtype=jnp.float32)  # detached target features

    x_out, loss = content_loss_forward(x, target, small_fallback_bytes=0)
    jax.block_until_ready((x_out, loss))
    ref_loss = jnp.mean((x - target) ** 2)
    assert jnp.allclose(x_out, x), "pass-through mismatch"
    assert jnp.allclose(loss, ref_loss, rtol=1e-5, atol=1e-6), (loss, ref_loss)

    # Test 2: same shape through the default wrapper (small-size XLA fallback).
    _, loss_fb = content_loss_forward(x, target)
    jax.block_until_ready(loss_fb)
    assert jnp.allclose(loss_fb, ref_loss, rtol=1e-5, atol=1e-6), (loss_fb, ref_loss)

    # Test 3: bf16 inputs with a 128-unaligned size -> exercises the
    # prefix + tail split (no padding, no masking) and narrow-dtype streaming.
    shape3 = (2, 64, 33, 33)
    x3 = jax.random.normal(kx2, shape3, dtype=jnp.bfloat16)
    t3 = jax.random.normal(kt2, shape3, dtype=jnp.bfloat16)
    x_out3, loss3 = content_loss_forward(x3, t3)
    jax.block_until_ready((x_out3, loss3))
    ref3 = jnp.mean(jnp.square(x3.astype(jnp.float32) - t3.astype(jnp.float32)))
    assert jnp.allclose(x_out3, x3), "pass-through mismatch (bf16)"
    assert jnp.allclose(loss3, ref3, rtol=1e-4, atol=1e-5), (loss3, ref3)

    print("KERNEL_OK")
</pallas_src>

<mosaic_0001>
module attributes {stable_mosaic.version = 11 : i64} {
  func.func @kernel(%arg0: i32, %arg1: memref<16x128xf32, #tpu.memory_space<vmem>>, %arg2: memref<16x128xf32, #tpu.memory_space<vmem>>, %arg3: memref<8x128xf32, #tpu.memory_space<vmem>>) attributes {dimension_semantics = [#tpu.dimension_semantics<parallel>], iteration_bounds = array<i64: 1>, scalar_prefetch = 0 : i64, scratch_operands = 0 : i64, tpu.core_type = #tpu.core_type<tc>, window_params = [{transform_indices = @transform_0, window_bounds = array<i64: 16, 128>}, {transform_indices = @transform_1, window_bounds = array<i64: 16, 128>}, {transform_indices = @transform_2, window_bounds = array<i64: 8, 128>}]} {
    %c0 = arith.constant 0 : index
    %c0_0 = arith.constant 0 : index
    %0 = vector.load %arg1[%c0, %c0_0] : memref<16x128xf32, #tpu.memory_space<vmem>>, vector<16x128xf32>
    %c0_1 = arith.constant 0 : index
    %c0_2 = arith.constant 0 : index
    %1 = vector.load %arg2[%c0_1, %c0_2] : memref<16x128xf32, #tpu.memory_space<vmem>>, vector<16x128xf32>
    %2 = arith.subf %0, %1 : vector<16x128xf32>
    %3 = arith.mulf %2, %2 : vector<16x128xf32>
    %4 = vector.shape_cast %3 : vector<16x128xf32> to vector<2x8x128xf32>
    %cst = arith.constant dense<0.000000e+00> : vector<8x128xf32>
    %5 = vector.multi_reduction <add>, %4, %cst [0] : vector<2x8x128xf32> to vector<8x128xf32>
    %c0_3 = arith.constant 0 : index
    %c0_4 = arith.constant 0 : index
    %6 = vector.load %arg3[%c0_3, %c0_4] : memref<8x128xf32, #tpu.memory_space<vmem>>, vector<8x128xf32>
    tpu.vector_store %arg3[%c0_3, %c0_4], %5 {strides = array<i32>} : memref<8x128xf32, #tpu.memory_space<vmem>>, vector<8x128xf32>,
    return
  }
  func.func @transform_0(%arg0: i32) -> (i32, i32) {
    %c0_i32 = arith.constant 0 : i32
    %c0_i32_0 = arith.constant 0 : i32
    return %arg0, %c0_i32 : i32, i32
  }
  func.func @transform_1(%arg0: i32) -> (i32, i32) {
    %c0_i32 = arith.constant 0 : i32
    %c0_i32_0 = arith.constant 0 : i32
    return %arg0, %c0_i32 : i32, i32
  }
  func.func @transform_2(%arg0: i32) -> (i32, i32) {
    %c0_i32 = arith.constant 0 : i32
    %c0_i32_0 = arith.constant 0 : i32
    return %arg0, %c0_i32 : i32, i32
  }
}

</mosaic_0001>

<llo_original>
// kernel: tpu_custom_call.1
$region0: #{tpu_custom_call.1}
  #allocation0 [shape = 'u32[]', space=smem, size = 0x4, offset = 0x4, fixed_abs, tag = 'smem constant byte address 0x4 - core index']
  #allocation1 [shape = 'u32[144,128]{1,0:T(1,128)}', space=vmem, size = 0x12000, scoped, tag = 'internal scratch']
  %s0 = inlined_call_operand.hbm [shape: f32[16,128], index: 0, kind: input, shape index: {}]
  %s1 = inlined_call_operand.hbm [shape: f32[16,128], index: 1, kind: input, shape index: {}]
  %s2 = inlined_call_operand.hbm [shape: f32[8,128], index: 2, kind: output, shape index: {}]
  %s3 = sld [smem:[#allocation0]]
  $region26: #{tpu_custom_call.1} parent=0
    _
  %s5 = ssub.s32 1, %s3
  %s6 = scalar_select 0, %s5, %s3
  $region1: #{tpu_custom_call.1} parent=0
    #allocation2 [shape = 'u8[8192]{0}', space=vmem, size = 0x2000, scoped, tag = 'input window, operand 0, single buffered']
    #allocation3 [shape = 's32[1]{0}', space=sflag, size = 0x4, scoped, tag = 'scoped memory for tpu_custom_call.1']
    #allocation4 [shape = 's32[1]{0}', space=sflag, size = 0x4, scoped, tag = 'scoped memory for tpu_custom_call.1']
    #allocation5 [shape = 'u8[8192]{0}', space=vmem, size = 0x2000, scoped, tag = 'input window, operand 1, single buffered']
    #allocation6 [shape = 's32[1]{0}', space=sflag, size = 0x4, scoped, tag = 'scoped memory for tpu_custom_call.1']
    #allocation7 [shape = 'u8[4096]{0}', space=vmem, size = 0x1000, scoped, tag = 'output window, operand 0, single buffered']
    %7 = vsyncpa [#allocation3], 0
    %8 = vsyncpa [#allocation6], 0
    %9 = vsyncpa [#allocation4], 0
    // Predicated region
    $region2: #{tpu_custom_call.1} parent=1 // pred_check
      _
    $region3: #{tpu_custom_call.1} parent=1 // pred_check_branch
      %11 = sbr.rel (0) target = $region5
    $region4: #{tpu_custom_call.1} parent=1 // pred_region
      %s13 = ssub.s32 256, 256
      %14 = vsyncadd [#allocation3], %s13
      %s15 = sshll.u32 [#allocation2], 4
      %s16 = int_to_ptr.vmem [resolvable:$true] %s15
      %21 = dma.hbm_to_vmem [thread:$0]  %s0, 256, %s16, [#allocation3], 128, 128, 8
    $region5: #{tpu_custom_call.1} parent=1 // pred_fallthru
      _
    // Predicated region
    $region6: #{tpu_custom_call.1} parent=1 // pred_check
      _
    $region7: #{tpu_custom_call.1} parent=1 // pred_check_branch
      %23 = sbr.rel (0) target = $region9
    $region8: #{tpu_custom_call.1} parent=1 // pred_region
      %s25 = ssub.s32 256, 256
      %26 = vsyncadd [#allocation6], %s25
      %s27 = sshll.u32 [#allocation5], 4
      %s28 = int_to_ptr.vmem [resolvable:$true] %s27
      %33 = dma.hbm_to_vmem [thread:$0]  %s1, 256, %s28, [#allocation6], 128, 128, 8
    $region9: #{tpu_custom_call.1} parent=1 // pred_fallthru
      _
    // Predicated region
    $region10: #{tpu_custom_call.1} parent=1 // pred_check
      _
    $region11: #{tpu_custom_call.1} parent=1 // pred_check_branch
      %35 = sbr.rel (0) target = $region13
    $region12: #{tpu_custom_call.1} parent=1 // pred_region
      %36 = dma.done [#allocation3], 256
    $region13: #{tpu_custom_call.1} parent=1 // pred_fallthru
      _
    // Predicated region
    $region14: #{tpu_custom_call.1} parent=1 // pred_check
      _
    $region15: #{tpu_custom_call.1} parent=1 // pred_check_branch
      %38 = sbr.rel (0) target = $region17
    $region16: #{tpu_custom_call.1} parent=1 // pred_region
      %39 = dma.done [#allocation6], 256
    $region17: #{tpu_custom_call.1} parent=1 // pred_fallthru
      _
    %v40 = vld [vmem:[#allocation2] sm:$0xff]
    %v41 = vld [vmem:[#allocation2 + $0x8] sm:$0xff]
    %v42 = vld [vmem:[#allocation5] sm:$0xff]
    %v43 = vld [vmem:[#allocation5 + $0x8] sm:$0xff]
    %v44 = vsub.f32 %v40, %v42
    %v45 = vsub.f32 %v41, %v43
    %v46 = vmul.f32 %v44, %v44
    %v47 = vmul.f32 %v45, %v45
    %v48 = vadd.f32 %v46, %v47
    %49 = vst [vmem:[#allocation7] sm:$0xff] %v48
    // Predicated region
    $region18: #{tpu_custom_call.1} parent=1 // pred_check
      _
    $region19: #{tpu_custom_call.1} parent=1 // pred_check_branch
      %51 = sbr.rel (0) target = $region21
    $region20: #{tpu_custom_call.1} parent=1 // pred_region
      %s53 = ssub.s32 128, 128
      %54 = vsyncadd [#allocation4], %s53
      %s56 = sshll.u32 [#allocation7], 4
      %s57 = int_to_ptr.vmem [resolvable:$true] %s56
      %59 = dma.vmem_to_hbm [thread:$0]  %s57, 128, %s2, [#allocation4]
    $region21: #{tpu_custom_call.1} parent=1 // pred_fallthru
      _
    // Predicated region
    $region22: #{tpu_custom_call.1} parent=1 // pred_check
      _
    $region23: #{tpu_custom_call.1} parent=1 // pred_check_branch
      %61 = sbr.rel (0) target = $region25
    $region24: #{tpu_custom_call.1} parent=1 // pred_region
      %62 = dma.done [#allocation4], 128
    $region25: #{tpu_custom_call.1} parent=1 // pred_fallthru
      _
    %63 = vsyncpa [#allocation3], 1
    %64 = vsyncpa [#allocation6], 1
    %65 = vsyncpa [#allocation4], 1

</llo_original>
